<compile_context>
chip_gen: v6e
topology: v6e:2x2x1
jax: 0.10.0
libtpu: 0.0.40
codegen_flags: <defaults>
</compile_context>

<pallas_src>
import numpy as np
import jax
import jax.numpy as jnp
from jax.experimental import pallas as pl
from jax.experimental.pallas import tpu as pltpu

_LANES = 128
_SUBLANES = 8


def _round_up(x, m):
    return (x + m - 1) // m * m


def _vmem_capacity_bytes():
    """Per-core VMEM capacity; conservative (v7x) fallback if the query fails."""
    cap = 64 << 20
    try:
        info = pltpu.get_tpu_info()
        cap = int(getattr(info, "vmem_capacity_bytes", cap))
    except Exception:
        pass
    return cap


def _choose_tiles(B, T_pad, D_pad, K, budget):
    """Pick (batch fold Bt, feature tile tD) so the per-step footprint fits budget."""
    left = (K - 1) // 2
    right = K - 1 - left
    A = _round_up(left, _SUBLANES)
    P_pad = _round_up(A + T_pad + right, _SUBLANES)

    def footprint(bt, td):
        # x + out blocks double-buffered (4x) + ~3 in-kernel temporaries (xm, acc, ...)
        # + pad scratch + mask blocks (lane-padded to 128) + weight blocks.
        return (bt * td * (7 * T_pad + P_pad) * 4
                + 2 * bt * T_pad * _LANES * 4
                + 2 * K * td * 4)

    # Candidate feature tiles: multiples of 128 that divide D_pad, largest first.
    cands = [c for c in range(D_pad, 0, -_LANES) if D_pad % c == 0]
    for td in cands:
        per_b = (td * (7 * T_pad + P_pad) + 2 * T_pad * _LANES) * 4
        avail = budget - 2 * K * td * 4
        bt = max(1, min(B, avail // per_b)) if avail > 0 else 1
        if footprint(bt, td) <= budget:
            return bt, td, footprint(bt, td)
    # TODO(synk): extremely long sequences would need halo-carrying time tiling;
    # fall back to the smallest lane-dense tile.
    return 1, _LANES, footprint(1, _LANES)


def fsmn_decoder_forward(inputs, mask, weight, kernel_size, cache=None):
    """Forward of MultiHeadedAttentionSANMDecoder (cache=None path).

    inputs: (B, T, D) activations
    mask:   (B, T, 1) binary padding mask (the module's `mask` argument)
    weight: (K, D) depthwise conv taps, weight[k, d] == torch_weight[d, 0, k]
    Returns (out, cache) with out: (B, T, D).
    Padding convention assumes sanm_shfit == 0: LEFT=(K-1)//2, RIGHT=K-1-LEFT.
    """
    # TODO(synk): streaming cache path (torch.cat((cache[:, :, 1:], x), dim=2))
    #             is not implemented; only the cache=None path.
    assert cache is None

    B, T, D = inputs.shape
    K = int(kernel_size)
    LEFT = (K - 1) // 2
    RIGHT = K - 1 - LEFT
    A = _round_up(LEFT, _SUBLANES)          # sublane-aligned interior offset

    T_pad = _round_up(T, _SUBLANES)
    D_pad = _round_up(D, _LANES)

    cap = _vmem_capacity_bytes()
    budget = int(cap * 0.6)                 # ~38 MiB on v7x, ~77 MiB on v5e/v6e
    Bt, tD, foot = _choose_tiles(B, T_pad, D_pad, K, budget)
    B_pad = _round_up(B, Bt)
    n_d = D_pad // tD
    n_b = B_pad // Bt
    P_pad = _round_up(A + T_pad + RIGHT, _SUBLANES)

    # Pad only when needed (skip the extra HBM round trip for aligned shapes).
    mask_f = mask.astype(jnp.float32)
    if (B_pad, T_pad, D_pad) != (B, T, D):
        x_in = jnp.pad(inputs, ((0, B_pad - B), (0, T_pad - T), (0, D_pad - D)))
    else:
        x_in = inputs
    if (B_pad, T_pad) != (B, T):
        m_in = jnp.pad(mask_f, ((0, B_pad - B), (0, T_pad - T), (0, 0)))
    else:
        m_in = mask_f
    if D_pad != D:
        w_in = jnp.pad(weight.astype(jnp.float32), ((0, 0), (0, D_pad - D)))
    else:
        w_in = weight.astype(jnp.float32)

    def kernel(x_ref, m_ref, w_ref, o_ref, pad_ref):
        # x_ref: (Bt, T_pad, tD)   m_ref: (Bt, T_pad, 1)   w_ref: (K, tD)
        # o_ref: (Bt, T_pad, tD)   pad_ref (scratch): (Bt, P_pad, tD)
        x = x_ref[...].astype(jnp.float32)
        m = m_ref[...]                               # binary padding mask
        xm = x * m                                   # masked input (also the residual)

        # Sublane-aligned scratch layout: zero halos [0, A) and [A+T_pad, P_pad);
        # the interior [A, A+T_pad) is fully overwritten -> all stores aligned.
        if A > 0:
            pad_ref[:, pl.ds(0, A), :] = jnp.zeros((Bt, A, tD), jnp.float32)
        tail = P_pad - A - T_pad
        if tail > 0:
            pad_ref[:, pl.ds(A + T_pad, tail), :] = jnp.zeros((Bt, tail, tD), jnp.float32)
        pad_ref[:, pl.ds(A, T_pad), :] = xm

        # Depthwise Conv1d (groups=D, no bias):
        #   out[b, t, d] = sum_k xp[b, t + k, d] * w[k, d]
        w = w_ref[...]                               # (K, tD), loaded once
        acc = xm                                     # residual init: (conv + x*m) * m
        for k in range(K):                           # static unroll over taps
            acc = acc + pad_ref[:, pl.ds(A - LEFT + k, T_pad), :] * w[k:k + 1, :][None]

        o_ref[...] = (acc * m).astype(o_ref.dtype)

    vmem_limit = int(min(max(2 * foot + (2 << 20), 16 << 20), cap * 3 // 4))

    out = pl.pallas_call(
        kernel,
        out_shape=jax.ShapeDtypeStruct((B_pad, T_pad, D_pad), inputs.dtype),
        grid_spec=pltpu.PrefetchScalarGridSpec(
            num_scalar_prefetch=0,
            # Feature tiles outermost, batch blocks innermost -> the weight block
            # index is constant across consecutive steps (no re-DMA of weights).
            grid=(n_d, n_b),
            in_specs=[
                pl.BlockSpec((Bt, T_pad, tD), lambda d, b: (b, 0, d)),
                pl.BlockSpec((Bt, T_pad, 1), lambda d, b: (b, 0, 0)),
                pl.BlockSpec((K, tD), lambda d, b: (0, d)),
            ],
            out_specs=pl.BlockSpec((Bt, T_pad, tD), lambda d, b: (b, 0, d)),
            scratch_shapes=[pltpu.VMEM((Bt, P_pad, tD), jnp.float32)],
        ),
        compiler_params=pltpu.CompilerParams(
            dimension_semantics=("parallel", "parallel"),
            vmem_limit_bytes=vmem_limit),
    )(x_in, m_in, w_in)

    if (B_pad, T_pad, D_pad) != (B, T, D):
        out = out[:B, :T, :D]
    return out, cache


def fsmn_decoder_reference(inputs, mask, weight, kernel_size):
    """Pure-JAX reference mirroring the PyTorch forward (cache=None)."""
    B, T, D = inputs.shape
    K = kernel_size
    left = (K - 1) // 2
    right = K - 1 - left
    m = mask.astype(jnp.float32)                       # (B, T, 1)
    x = inputs.astype(jnp.float32) * m
    xp = jnp.pad(x, ((0, 0), (left, right), (0, 0)))   # (B, T+K-1, D)
    out = jnp.zeros((B, T, D), jnp.float32)
    for k in range(K):
        out = out + xp[:, k:k + T, :] * weight[k][None, None, :]
    out = (out + inputs) * m
    return out.astype(inputs.dtype)


def _run_case(key, B, T, D, K, lengths_list):
    k_in, k_w = jax.random.split(key)
    inputs = jax.random.normal(k_in, (B, T, D), dtype=jnp.float32)
    lengths = jnp.array(lengths_list, dtype=jnp.int32)
    mask = (jnp.arange(T)[None, :] < lengths[:, None]).astype(jnp.float32)[..., None]
    # Depthwise-conv weight in (K, D) layout (== PyTorch (D, 1, K) transposed).
    weight = 0.1 * jax.random.normal(k_w, (K, D), dtype=jnp.float32)

    out, _ = fsmn_decoder_forward(inputs, mask, weight, K, cache=None)
    out = jax.block_until_ready(out)

    ref = fsmn_decoder_reference(inputs, mask, weight, K)
    np.testing.assert_allclose(np.asarray(out), np.asarray(ref), rtol=1e-5, atol=1e-5)


if __name__ == "__main__":
    key = jax.random.PRNGKey(0)
    k1, k2 = jax.random.split(key)

    # Small shapes consistent with the module: batch=2, seq=8, n_feat=32, K=5.
    _run_case(k1, B=2, T=8, D=32, K=5, lengths_list=[8, 5])

    # Exercise padding + unaligned feature dim: D=300 -> D_pad=384 (single 384 tile).
    _run_case(k2, B=3, T=12, D=300, K=11, lengths_list=[12, 7, 1])

    print("KERNEL_OK")
</pallas_src>

<mosaic_0001>
module attributes {stable_mosaic.version = 11 : i64} {
  func.func @kernel(%arg0: i32, %arg1: i32, %arg2: memref<2x8x128xf32, #tpu.memory_space<vmem>>, %arg3: memref<2x8x1xf32, #tpu.memory_space<vmem>>, %arg4: memref<5x128xf32, #tpu.memory_space<vmem>>, %arg5: memref<2x8x128xf32, #tpu.memory_space<vmem>>, %arg6: memref<2x24x128xf32, #tpu.memory_space<vmem>>) attributes {dimension_semantics = [#tpu.dimension_semantics<parallel>, #tpu.dimension_semantics<parallel>], iteration_bounds = array<i64: 1, 1>, scalar_prefetch = 0 : i64, scratch_operands = 1 : i64, tpu.core_type = #tpu.core_type<tc>, window_params = [{transform_indices = @transform_0, window_bounds = array<i64: 2, 8, 128>}, {transform_indices = @transform_1, window_bounds = array<i64: 2, 8, 1>}, {transform_indices = @transform_2, window_bounds = array<i64: 5, 128>}, {transform_indices = @transform_3, window_bounds = array<i64: 2, 8, 128>}]} {
    %c0 = arith.constant 0 : index
    %c0_0 = arith.constant 0 : index
    %c0_1 = arith.constant 0 : index
    %0 = vector.load %arg2[%c0, %c0_0, %c0_1] : memref<2x8x128xf32, #tpu.memory_space<vmem>>, vector<2x8x128xf32>
    %c0_2 = arith.constant 0 : index
    %c0_3 = arith.constant 0 : index
    %c0_4 = arith.constant 0 : index
    %1 = vector.load %arg3[%c0_2, %c0_3, %c0_4] : memref<2x8x1xf32, #tpu.memory_space<vmem>>, vector<2x8x1xf32>
    %2 = vector.broadcast %1 : vector<2x8x1xf32> to vector<2x8x128xf32>
    %3 = arith.mulf %0, %2 : vector<2x8x128xf32>
    %cst = arith.constant 0.000000e+00 : f32
    %4 = vector.broadcast %cst : f32 to vector<2x8x128xf32>
    %c0_5 = arith.constant 0 : index
    %c0_6 = arith.constant 0 : index
    %c0_7 = arith.constant 0 : index
    %5 = vector.load %arg6[%c0_5, %c0_6, %c0_7] : memref<2x24x128xf32, #tpu.memory_space<vmem>>, vector<2x8x128xf32>
    tpu.vector_store %arg6[%c0_5, %c0_6, %c0_7], %4 {strides = array<i32>} : memref<2x24x128xf32, #tpu.memory_space<vmem>>, vector<2x8x128xf32>,
    %cst_8 = arith.constant 0.000000e+00 : f32
    %6 = vector.broadcast %cst_8 : f32 to vector<2x8x128xf32>
    %c0_9 = arith.constant 0 : index
    %c16 = arith.constant 16 : index
    %c0_10 = arith.constant 0 : index
    %7 = vector.load %arg6[%c0_9, %c16, %c0_10] : memref<2x24x128xf32, #tpu.memory_space<vmem>>, vector<2x8x128xf32>
    tpu.vector_store %arg6[%c0_9, %c16, %c0_10], %6 {strides = array<i32>} : memref<2x24x128xf32, #tpu.memory_space<vmem>>, vector<2x8x128xf32>,
    %c0_11 = arith.constant 0 : index
    %c8 = arith.constant 8 : index
    %c0_12 = arith.constant 0 : index
    %8 = vector.load %arg6[%c0_11, %c8, %c0_12] : memref<2x24x128xf32, #tpu.memory_space<vmem>>, vector<2x8x128xf32>
    tpu.vector_store %arg6[%c0_11, %c8, %c0_12], %3 {strides = array<i32>} : memref<2x24x128xf32, #tpu.memory_space<vmem>>, vector<2x8x128xf32>,
    %c0_13 = arith.constant 0 : index
    %c0_14 = arith.constant 0 : index
    %9 = vector.load %arg4[%c0_13, %c0_14] : memref<5x128xf32, #tpu.memory_space<vmem>>, vector<5x128xf32>
    %c0_15 = arith.constant 0 : index
    %c6 = arith.constant 6 : index
    %c0_16 = arith.constant 0 : index
    %10 = vector.load %arg6[%c0_15, %c6, %c0_16] : memref<2x24x128xf32, #tpu.memory_space<vmem>>, vector<2x8x128xf32>
    %11 = vector.extract_strided_slice %9 {offsets = [0, 0], sizes = [1, 128], strides = [1, 1]} : vector<5x128xf32> to vector<1x128xf32>
    %12 = vector.shape_cast %11 : vector<1x128xf32> to vector<1x1x128xf32>
    %13 = vector.broadcast %12 : vector<1x1x128xf32> to vector<2x8x128xf32>
    %14 = arith.mulf %10, %13 : vector<2x8x128xf32>
    %15 = arith.addf %3, %14 : vector<2x8x128xf32>
    %c0_17 = arith.constant 0 : index
    %c7 = arith.constant 7 : index
    %c0_18 = arith.constant 0 : index
    %16 = vector.load %arg6[%c0_17, %c7, %c0_18] : memref<2x24x128xf32, #tpu.memory_space<vmem>>, vector<2x8x128xf32>
    %17 = vector.extract_strided_slice %9 {offsets = [1, 0], sizes = [1, 128], strides = [1, 1]} : vector<5x128xf32> to vector<1x128xf32>
    %18 = vector.shape_cast %17 : vector<1x128xf32> to vector<1x1x128xf32>
    %19 = vector.broadcast %18 : vector<1x1x128xf32> to vector<2x8x128xf32>
    %20 = arith.mulf %16, %19 : vector<2x8x128xf32>
    %21 = arith.addf %15, %20 : vector<2x8x128xf32>
    %c0_19 = arith.constant 0 : index
    %c8_20 = arith.constant 8 : index
    %c0_21 = arith.constant 0 : index
    %22 = vector.load %arg6[%c0_19, %c8_20, %c0_21] : memref<2x24x128xf32, #tpu.memory_space<vmem>>, vector<2x8x128xf32>
    %23 = vector.extract_strided_slice %9 {offsets = [2, 0], sizes = [1, 128], strides = [1, 1]} : vector<5x128xf32> to vector<1x128xf32>
    %24 = vector.shape_cast %23 : vector<1x128xf32> to vector<1x1x128xf32>
    %25 = vector.broadcast %24 : vector<1x1x128xf32> to vector<2x8x128xf32>
    %26 = arith.mulf %22, %25 : vector<2x8x128xf32>
    %27 = arith.addf %21, %26 : vector<2x8x128xf32>
    %c0_22 = arith.constant 0 : index
    %c9 = arith.constant 9 : index
    %c0_23 = arith.constant 0 : index
    %28 = vector.load %arg6[%c0_22, %c9, %c0_23] : memref<2x24x128xf32, #tpu.memory_space<vmem>>, vector<2x8x128xf32>
    %29 = vector.extract_strided_slice %9 {offsets = [3, 0], sizes = [1, 128], strides = [1, 1]} : vector<5x128xf32> to vector<1x128xf32>
    %30 = vector.shape_cast %29 : vector<1x128xf32> to vector<1x1x128xf32>
    %31 = vector.broadcast %30 : vector<1x1x128xf32> to vector<2x8x128xf32>
    %32 = arith.mulf %28, %31 : vector<2x8x128xf32>
    %33 = arith.addf %27, %32 : vector<2x8x128xf32>
    %c0_24 = arith.constant 0 : index
    %c10 = arith.constant 10 : index
    %c0_25 = arith.constant 0 : index
    %34 = vector.load %arg6[%c0_24, %c10, %c0_25] : memref<2x24x128xf32, #tpu.memory_space<vmem>>, vector<2x8x128xf32>
    %35 = vector.extract_strided_slice %9 {offsets = [4, 0], sizes = [1, 128], strides = [1, 1]} : vector<5x128xf32> to vector<1x128xf32>
    %36 = vector.shape_cast %35 : vector<1x128xf32> to vector<1x1x128xf32>
    %37 = vector.broadcast %36 : vector<1x1x128xf32> to vector<2x8x128xf32>
    %38 = arith.mulf %34, %37 : vector<2x8x128xf32>
    %39 = arith.addf %33, %38 : vector<2x8x128xf32>
    %40 = vector.broadcast %1 : vector<2x8x1xf32> to vector<2x8x128xf32>
    %41 = arith.mulf %39, %40 : vector<2x8x128xf32>
    %c0_26 = arith.constant 0 : index
    %c0_27 = arith.constant 0 : index
    %c0_28 = arith.constant 0 : index
    %42 = vector.load %arg5[%c0_26, %c0_27, %c0_28] : memref<2x8x128xf32, #tpu.memory_space<vmem>>, vector<2x8x128xf32>
    tpu.vector_store %arg5[%c0_26, %c0_27, %c0_28], %41 {strides = array<i32>} : memref<2x8x128xf32, #tpu.memory_space<vmem>>, vector<2x8x128xf32>,
    return
  }
  func.func @transform_0(%arg0: i32, %arg1: i32) -> (i32, i32, i32) {
    %c0_i32 = arith.constant 0 : i32
    %c0_i32_0 = arith.constant 0 : i32
    return %arg1, %c0_i32, %arg0 : i32, i32, i32
  }
  func.func @transform_1(%arg0: i32, %arg1: i32) -> (i32, i32, i32) {
    %c0_i32 = arith.constant 0 : i32
    %c0_i32_0 = arith.constant 0 : i32
    %c0_i32_1 = arith.constant 0 : i32
    return %arg1, %c0_i32, %c0_i32_0 : i32, i32, i32
  }
  func.func @transform_2(%arg0: i32, %arg1: i32) -> (i32, i32) {
    %c0_i32 = arith.constant 0 : i32
    %c0_i32_0 = arith.constant 0 : i32
    return %c0_i32, %arg0 : i32, i32
  }
  func.func @transform_3(%arg0: i32, %arg1: i32) -> (i32, i32, i32) {
    %c0_i32 = arith.constant 0 : i32
    %c0_i32_0 = arith.constant 0 : i32
    return %arg1, %c0_i32, %arg0 : i32, i32, i32
  }
}

</mosaic_0001>

<llo_original>
// kernel: tpu_custom_call.1
$region0: #{tpu_custom_call.1}
  #allocation0 [shape = 'u32[]', space=smem, size = 0x4, offset = 0x4, fixed_abs, tag = 'smem constant byte address 0x4 - core index']
  #allocation1 [shape = 'u32[144,128]{1,0:T(1,128)}', space=vmem, size = 0x12000, scoped, tag = 'internal scratch']
  #allocation2 [shape = 'f32[2,24,128]{2,1,0:T(8,128)}', space=vmem, size = 0x6000, scoped, tag = 'scratch operand']
  %s0 = inlined_call_operand.vmem [shape: f32[2,8,128], index: 0, kind: input, shape index: {}]
  %s1 = inlined_call_operand.vmem [shape: f32[2,8,1], index: 1, kind: input, shape index: {}]
  %s2 = inlined_call_operand.hbm [shape: f32[5,128], index: 2, kind: input, shape index: {}]
  %s3 = inlined_call_operand.hbm [shape: f32[2,8,128], index: 3, kind: output, shape index: {}]
  %s4 = sld [smem:[#allocation0]]
  $region26: #{tpu_custom_call.1} parent=0
    _
  %s6 = ssub.s32 1, %s4
  %s7 = scalar_select 0, %s6, %s4
  $region1: #{tpu_custom_call.1} parent=0
    #allocation3 [shape = 'u8[4096]{0}', space=vmem, size = 0x1000, scoped, tag = 'input window, operand 2, single buffered']
    #allocation4 [shape = 's32[1]{0}', space=sflag, size = 0x4, scoped, tag = 'scoped memory for tpu_custom_call.1']
    #allocation5 [shape = 's32[1]{0}', space=sflag, size = 0x4, scoped, tag = 'scoped memory for tpu_custom_call.1']
    #allocation6 [shape = 'u8[8192]{0}', space=vmem, size = 0x2000, scoped, tag = 'output window, operand 0, single buffered']
    %8 = vsyncpa [#allocation4], 0
    %9 = vsyncpa [#allocation5], 0
    // Predicated region
    $region2: #{tpu_custom_call.1} parent=1 // pred_check
      _
    $region3: #{tpu_custom_call.1} parent=1 // pred_check_branch
      %11 = sbr.rel (0) target = $region5
    $region4: #{tpu_custom_call.1} parent=1 // pred_region
      _
    $region5: #{tpu_custom_call.1} parent=1 // pred_fallthru
      _
    // Predicated region
    $region6: #{tpu_custom_call.1} parent=1 // pred_check
      _
    $region7: #{tpu_custom_call.1} parent=1 // pred_check_branch
      %13 = sbr.rel (0) target = $region9
    $region8: #{tpu_custom_call.1} parent=1 // pred_region
      _
    $region9: #{tpu_custom_call.1} parent=1 // pred_fallthru
      _
    // Predicated region
    $region10: #{tpu_custom_call.1} parent=1 // pred_check
      _
    $region11: #{tpu_custom_call.1} parent=1 // pred_check_branch
      %15 = sbr.rel (0) target = $region13
    $region12: #{tpu_custom_call.1} parent=1 // pred_region
      %s17 = ssub.s32 128, 128
      %18 = vsyncadd [#allocation4], %s17
      %s20 = sshll.u32 [#allocation3], 4
      %s21 = int_to_ptr.vmem [resolvable:$true] %s20
      %23 = dma.hbm_to_vmem [thread:$0]  %s2, 128, %s21, [#allocation4]
    $region13: #{tpu_custom_call.1} parent=1 // pred_fallthru
      _
    // Predicated region
    $region14: #{tpu_custom_call.1} parent=1 // pred_check
      _
    $region15: #{tpu_custom_call.1} parent=1 // pred_check_branch
      %25 = sbr.rel (0) target = $region17
    $region16: #{tpu_custom_call.1} parent=1 // pred_region
      %26 = dma.done [#allocation4], 128
    $region17: #{tpu_custom_call.1} parent=1 // pred_fallthru
      _
    %v27 = vld [vmem:[%s0] sm:$0xff]
    %v28 = vld [vmem:[%s0 + $0x8] sm:$0xff]
    %v29 = vld [vmem:[%s1] sm:$0xff]
    %v30 = vld [vmem:[%s1 + $0x8] sm:$0xff]
    %32 = vset.pattern.permute.xlu0 0
    %33 = vperm.xlu0 %32, %v29
    %v34 = vpop.permute.xlu0 %33
    %37 = vset.pattern.permute.xlu0 0
    %38 = vperm.xlu0 %37, %v30
    %v39 = vpop.permute.xlu0 %38
    %v41 = vmul.f32 %v27, %v34
    %v42 = vmul.f32 %v28, %v39
    %43 = vst [vmem:[#allocation2] sm:$0xff] 0.0
    %44 = vst [vmem:[#allocation2 + $0x18] sm:$0xff] 0.0
    %45 = vst [vmem:[#allocation2 + $0x10] sm:$0xff] 0.0
    %46 = vst [vmem:[#allocation2 + $0x28] sm:$0xff] 0.0
    %47 = vst [vmem:[#allocation2 + $0x8] sm:$0xff] %v41
    %48 = vst [vmem:[#allocation2 + $0x20] sm:$0xff] %v42
    %v49 = vld [vmem:[#allocation3] sm:$0x1f]
    %v50 = vld [vmem:[#allocation2 + $0x6] sm:$0xff]
    %v51 = vld [vmem:[#allocation2 + $0x1e] sm:$0xff]
    %v52 = vlaneseq
    %v53 = vshrl.u32 %v52, 7
    %v54 = vsub.s32 0, %v53
    %v55 = vrot.slane %v49, %v54
    %v56 = vmul.f32 %v50, %v55
    %v57 = vmul.f32 %v51, %v55
    %v58 = vadd.f32 %v41, %v56
    %v59 = vadd.f32 %v42, %v57
    %v60 = vld [vmem:[#allocation2 + $0x7] sm:$0xff]
    %v61 = vld [vmem:[#allocation2 + $0x1f] sm:$0xff]
    %v62 = vlaneseq
    %v63 = vshrl.u32 %v62, 7
    %v64 = vsub.s32 1, %v63
    %v65 = vrot.slane %v49, %v64
    %v66 = vmul.f32 %v60, %v65
    %v67 = vmul.f32 %v61, %v65
    %v68 = vadd.f32 %v58, %v66
    %v69 = vadd.f32 %v59, %v67
    %v70 = vld [vmem:[#allocation2 + $0x8] sm:$0xff]
    %v71 = vld [vmem:[#allocation2 + $0x20] sm:$0xff]
    %v72 = vlaneseq
    %v73 = vshrl.u32 %v72, 7
    %v74 = vsub.s32 2, %v73
    %v75 = vrot.slane %v49, %v74
    %v76 = vmul.f32 %v70, %v75
    %v77 = vmul.f32 %v71, %v75
    %v78 = vadd.f32 %v68, %v76
    %v79 = vadd.f32 %v69, %v77
    %v80 = vld [vmem:[#allocation2 + $0x9] sm:$0xff]
    %v81 = vld [vmem:[#allocation2 + $0x21] sm:$0xff]
    %v82 = vlaneseq
    %v83 = vshrl.u32 %v82, 7
    %v84 = vsub.s32 3, %v83
    %v85 = vrot.slane %v49, %v84
    %v86 = vmul.f32 %v80, %v85
    %v87 = vmul.f32 %v81, %v85
    %v88 = vadd.f32 %v78, %v86
    %v89 = vadd.f32 %v79, %v87
    %v90 = vld [vmem:[#allocation2 + $0xa] sm:$0xff]
    %v91 = vld [vmem:[#allocation2 + $0x22] sm:$0xff]
    %v92 = vlaneseq
    %v93 = vshrl.u32 %v92, 7
    %v94 = vsub.s32 4, %v93
    %v95 = vrot.slane %v49, %v94
    %v96 = vmul.f32 %v90, %v95
    %v97 = vmul.f32 %v91, %v95
    %v98 = vadd.f32 %v88, %v96
    %v99 = vadd.f32 %v89, %v97
    %v100 = vmul.f32 %v98, %v34
    %v101 = vmul.f32 %v99, %v39
    %102 = vst [vmem:[#allocation6] sm:$0xff] %v100
    %103 = vst [vmem:[#allocation6 + $0x8] sm:$0xff] %v101
    // Predicated region
    $region18: #{tpu_custom_call.1} parent=1 // pred_check
      _
    $region19: #{tpu_custom_call.1} parent=1 // pred_check_branch
      %105 = sbr.rel (0) target = $region21
    $region20: #{tpu_custom_call.1} parent=1 // pred_region
      %s107 = ssub.s32 256, 256
      %108 = vsyncadd [#allocation5], %s107
      %s109 = sshll.u32 [#allocation6], 4
      %s110 = int_to_ptr.vmem [resolvable:$true] %s109
      %115 = dma.vmem_to_hbm [thread:$0]  %s110, 256, %s3, [#allocation5], 128, 128, 8
    $region21: #{tpu_custom_call.1} parent=1 // pred_fallthru
      _
    // Predicated region
    $region22: #{tpu_custom_call.1} parent=1 // pred_check
      _
    $region23: #{tpu_custom_call.1} parent=1 // pred_check_branch
      %117 = sbr.rel (0) target = $region25
    $region24: #{tpu_custom_call.1} parent=1 // pred_region
      %118 = dma.done [#allocation5], 256
    $region25: #{tpu_custom_call.1} parent=1 // pred_fallthru
      _
    %119 = vsyncpa [#allocation4], 1
    %120 = vsyncpa [#allocation5], 1

</llo_original>
